<compile_context>
chip_gen: v6e
topology: v6e:2x2x1
jax: 0.10.0
libtpu: 0.0.40
codegen_flags: <defaults>
</compile_context>

<pallas_src>
import jax
import jax.numpy as jnp
import numpy as np
from jax.experimental import pallas as pl
from jax.experimental.pallas import tpu as pltpu


def _round_up(x, m):
    return ((x + m - 1) // m) * m


def _choose_tb(batch, tb, min_blocks=2):
    """Batch tile: as big as `tb` (sweepable), multiple of 8, but keep at least
    `min_blocks` grid steps when the batch allows it so both v7x TensorCores
    get work from the 'parallel' batch axis."""
    b8 = _round_up(max(batch, 1), 8)
    target = _round_up(pl.cdiv(b8, min_blocks), 8)
    return max(8, min(tb, b8, target))


# ----------------------------- Pallas kernels ------------------------------

def _cgmm_layer0_kernel(em_ref, prior_ref, post_ref, lik_ref):
    """Layer-0 E-step block: posterior = normalize(emission * prior)."""
    # TODO(synk): at C<<128 this is pure VPU work on 8/128 lanes; leaving it to
    # XLA fusion is equally valid - kept as a kernel for API parity.
    em = em_ref[...]                                       # [TB, C]
    numer = em * prior_ref[...]                            # [TB, C]
    denom = jnp.sum(numer, axis=1, keepdims=True)          # [TB, 1]
    inv = pl.reciprocal(denom, approx=True)
    inv = inv * (2.0 - denom * inv)                        # one Newton step -> ~exact
    post = numer * inv
    post_ref[...] = post
    # xlogy-style guard: a zero numerator contributes 0 (post is 0 there too).
    safe_log = jnp.log(jnp.where(numer > 0.0, numer, 1.0))
    lik_ref[...] = jnp.sum(post * safe_log, axis=1, keepdims=True)


def _cgmm_layer_kernel(em_ref, stats_ref, w1_ref, w2_ref, s_ref, logla_ref,
                       post_ref, lik_ref):
    """Generic-layer E-step block (fused block-diagonal formulation).

    em_ref    : [TB, C]        emission_of_labels block (f32)
    stats_ref : [TB, N*C2]     neighbour statistics block (f32 or bf16)
    w1_ref    : [N*C2, 2*NCP]  [blockdiag(la*trans^T) | blockdiag(ones)] (0-padded)
    w2_ref    : [N*C2, NCP]    blockdiag(la*(trans*log trans)^T)         (0-padded)
    s_ref     : [NCP, C]       group-sum matrix (flat (n,c) lanes -> c)
    logla_ref : [1, NCP]       log(layerS)+log(arcS), repeated C times per group
    post_ref  : [TB, C]        posterior_ui output (true width, no lane padding)
    lik_ref   : [TB, 1]        per-sample likelihood partials
    """
    ncp = w2_ref.shape[1]
    s = stats_ref[...].astype(jnp.float32)                 # [TB, N*C2]
    em = em_ref[...]                                        # [TB, C]

    # One fused MXU pass gives the per-group transition contraction (with
    # layerS*arcS pre-folded) AND the neighbour counts (indicator columns);
    # a second gives the trans*log(trans) contraction against stats^2.
    big1 = jnp.dot(s, w1_ref[...], preferred_element_type=jnp.float32)       # [TB, 2*NCP]
    inner = jnp.dot(s * s, w2_ref[...], preferred_element_type=jnp.float32)  # [TB, NCP]
    tmpla = big1[:, :ncp]                                   # la * sum_c2 trans*stats
    nb = big1[:, ncp:]                                      # neighbDim, lane-tiled
    nb = jnp.where(nb == 0.0, 1.0, nb)
    inv_nb = pl.reciprocal(nb, approx=True)                 # EUP; error cancels num/den

    q = tmpla * inv_nb                                      # unnormalized post / em
    w = (tmpla * logla_ref[...] + inner) * inv_nb           # lik(2+3+4) numerator / em

    # Group sums over the flat (n,c) lanes; emission applied afterwards so the
    # norm / likelihood reductions are only C lanes wide and em stays exact.
    qs = jnp.dot(q, s_ref[...], preferred_element_type=jnp.float32)          # [TB, C]
    ws = jnp.dot(w, s_ref[...], preferred_element_type=jnp.float32)          # [TB, C]
    num_c = em * qs                                         # [TB, C]
    norm = jnp.sum(num_c, axis=1, keepdims=True)            # [TB, 1]
    norm = jnp.where(norm == 0.0, 1.0, norm)
    inv_norm = pl.reciprocal(norm, approx=True)
    inv_norm = inv_norm * (2.0 - norm * inv_norm)           # Newton -> ~exact f32

    post_ui = num_c * inv_norm
    post_ref[...] = post_ui
    lik_ref[...] = jnp.sum(post_ui * jnp.log(em) + (em * ws) * inv_norm,
                           axis=1, keepdims=True)


# ------------------------------- wrappers -----------------------------------

def build_cgmm_layer_weights(emission, layerS, arcS, transition):
    """Grid-invariant weights for cgmm_layer_forward (build once per E-M round;
    hoisted out of the per-call path as per the perf review)."""
    # TODO(synk): the block-diagonal W1/W2 are O((N*C)*(N*C2)) dense with 1/N
    # density; for N*C beyond ~512 switch to a per-group grid axis
    # ("arbitrary", accumulate in VMEM scratch) instead of this fused form.
    f32 = jnp.float32
    L, A, C, C2 = transition.shape
    N = L * A
    NC, NC2 = N * C, N * C2
    NCP = max(128, _round_up(NC, 128))     # lane-padded flat (group, state) width

    la = (layerS[:, None] * arcS).reshape(N).astype(f32)                 # layerS*arcS
    logla = (jnp.log(layerS)[:, None] + jnp.log(arcS)).reshape(N).astype(f32)
    trans_n = transition.reshape(N, C, C2).astype(f32)
    transT = jnp.transpose(trans_n, (0, 2, 1))                           # [N, C2, C]
    g_n = trans_n * jnp.log(jnp.where(trans_n > 0, trans_n, 1.0))        # xlogy-safe
    gT = jnp.transpose(g_n, (0, 2, 1))

    eye_n = jnp.eye(N, dtype=f32)
    # layerS*arcS folded in (removes a [TB,NCP] multiply + an input stream).
    wt = jnp.einsum('n,ndc,nm->ndmc', la, transT, eye_n).reshape(NC2, NC)
    wg = jnp.einsum('n,ndc,nm->ndmc', la, gT, eye_n).reshape(NC2, NC)
    irep = jnp.einsum('nm,dc->ndmc', eye_n,
                      jnp.ones((C2, C), f32)).reshape(NC2, NC)
    pad_c = ((0, 0), (0, NCP - NC))
    w1 = jnp.concatenate([jnp.pad(wt, pad_c), jnp.pad(irep, pad_c)], axis=1)
    w2 = jnp.pad(wg, pad_c)
    s_mat = jnp.pad(jnp.tile(jnp.eye(C, dtype=f32), (N, 1)),
                    ((0, NCP - NC), (0, 0)))                             # [NCP, C]
    logla_t = jnp.pad(jnp.repeat(logla, C), (0, NCP - NC)).reshape(1, NCP)
    return {'w1': w1, 'w2': w2, 's': s_mat, 'logla': logla_t,
            'emission': emission.astype(f32)}


def cgmm_layer0_forward(labels, prior, emission, *, tb=512):
    """forward() of a layer-0 CGMM_Layer: returns (posterior_estimate, likelihood)."""
    f32 = jnp.float32
    em = emission[labels].astype(f32)                      # [B, C]  gather (XLA glue)
    B, C = em.shape
    TB = _choose_tb(B, tb)
    nblk = pl.cdiv(B, TB)
    prior2 = prior.reshape(1, C).astype(f32)

    post, lik_rows = pl.pallas_call(
        _cgmm_layer0_kernel,
        out_shape=(jax.ShapeDtypeStruct((B, C), f32),
                   jax.ShapeDtypeStruct((B, 1), f32)),
        grid=(nblk,),
        in_specs=[pl.BlockSpec((TB, C), lambda i: (i, 0)),
                  pl.BlockSpec((1, C), lambda i: (0, 0))],
        out_specs=(pl.BlockSpec((TB, C), lambda i: (i, 0)),
                   pl.BlockSpec((TB, 1), lambda i: (i, 0))),
        compiler_params=pltpu.CompilerParams(
            dimension_semantics=("parallel",)),
    )(em, prior2)
    return post, jnp.sum(lik_rows)


def cgmm_layer_forward(labels, stats, weights, *, tb=512):
    """forward() of a generic CGMM_Layer: returns (posterior_ui, likelihood).

    `stats` may be float32 or bfloat16; bf16 halves the dominant HBM input
    stream (neighbour counts <= 256 are exact in bf16).
    """
    f32 = jnp.float32
    w1, w2 = weights['w1'], weights['w2']
    s_mat, logla_t = weights['s'], weights['logla']
    NC2 = w1.shape[0]
    NCP = w2.shape[1]
    C = s_mat.shape[1]
    B = labels.shape[0]

    em = weights['emission'][labels]                       # [B, C] gather (XLA glue)
    stats2 = stats.reshape(B, NC2)                         # plain reshape, no pad/copy

    TB = _choose_tb(B, tb)
    nblk = pl.cdiv(B, TB)

    # TODO(synk): on v7x, single-buffer the grid-invariant weight inputs
    # (pipeline_mode=pl.Buffered(1) or a one-shot DMA into scratch) once N*C
    # grows; at this size double-buffering them costs only ~100 KiB of VMEM.
    post, lik_rows = pl.pallas_call(
        _cgmm_layer_kernel,
        out_shape=(jax.ShapeDtypeStruct((B, C), f32),
                   jax.ShapeDtypeStruct((B, 1), f32)),
        grid=(nblk,),
        in_specs=[pl.BlockSpec((TB, C), lambda i: (i, 0)),          # em
                  pl.BlockSpec((TB, NC2), lambda i: (i, 0)),        # stats
                  pl.BlockSpec((NC2, 2 * NCP), lambda i: (0, 0)),   # W1 (invariant)
                  pl.BlockSpec((NC2, NCP), lambda i: (0, 0)),       # W2 (invariant)
                  pl.BlockSpec((NCP, C), lambda i: (0, 0)),         # group-sum S
                  pl.BlockSpec((1, NCP), lambda i: (0, 0))],        # log layerS+arcS
        out_specs=(pl.BlockSpec((TB, C), lambda i: (i, 0)),
                   pl.BlockSpec((TB, 1), lambda i: (i, 0))),
        compiler_params=pltpu.CompilerParams(
            dimension_semantics=("parallel",)),
    )(em, stats2, w1, w2, s_mat, logla_t)
    # TODO(synk): the per-sample likelihood rows could be reduced to one scalar
    # per grid step (SMEM output) to avoid the narrow [TB,1] writebacks.
    return post, jnp.sum(lik_rows)


# --------------------------- plain-JAX references ---------------------------

def _ref_layer0(labels, prior, emission):
    em = emission[labels]
    numer = em * prior[None, :]
    denom = numer.sum(1, keepdims=True)
    post = numer / denom
    return post, jnp.sum(post * jnp.log(numer))


def _ref_layer(labels, stats, emission, layerS, arcS, transition):
    B = labels.shape[0]
    L, A, C, C2 = transition.shape
    em = emission[labels]                                            # [B, C]
    neighb = stats.sum(3)
    neighb = jnp.where(neighb == 0.0, 1.0, neighb)                   # [B, L, A]
    tmp = jnp.sum(transition[None] * stats[:, :, :, None, :], axis=4)
    tmp2 = (layerS[:, None] * arcS).reshape(1, L, A, 1)
    div_neighb = neighb.reshape(B, L, A, 1)
    unnorm = tmp * tmp2 / div_neighb * em.reshape(B, 1, 1, C)
    norm = unnorm.sum(axis=(1, 2, 3)).reshape(B, 1, 1, 1)
    norm = jnp.where(norm == 0.0, 1.0, norm)
    post = unnorm / norm
    post_uli = post.sum(2)
    post_ui = post_uli.sum(1)
    log_trans = jnp.log(transition)
    num = (transition * layerS.reshape(L, 1, 1, 1) * arcS.reshape(L, A, 1, 1)
           / div_neighb[..., None])
    num = num * em.reshape(B, 1, 1, C, 1)
    num = num * stats[:, :, :, None, :]
    den = num.sum(axis=(1, 2, 3, 4), keepdims=True)
    den = jnp.where(den == 0.0, 1.0, den)
    eulaij = num / den
    l1 = jnp.sum(post_ui * jnp.log(em))
    l2 = jnp.sum(post_uli * jnp.log(layerS).reshape(1, L, 1))
    l3 = jnp.sum(post * jnp.log(arcS).reshape(1, L, A, 1))
    l4 = jnp.sum(eulaij * stats[:, :, :, None, :] * log_trans)
    return post_ui, l1 + l2 + l3 + l4


# ---------------------------------- main -------------------------------------

if __name__ == "__main__":
    key = jax.random.PRNGKey(0)
    B, K, C, C2, L, orig_A = 20, 5, 8, 8, 2, 2
    A = orig_A + 2                                    # as in __init__: a + 2
    ks = jax.random.split(key, 8)

    # deterministic parameter init mirroring the module's uniform + normalize
    prior = jax.random.uniform(ks[0], (C,), jnp.float32)
    prior = prior / prior.sum()
    em_tab = jax.random.uniform(ks[1], (K, C), jnp.float32)          # CategoricalEmission
    em_tab = em_tab / em_tab.sum(0, keepdims=True)
    layerS = jax.random.uniform(ks[2], (L,), jnp.float32)
    layerS = layerS / layerS.sum()
    arcS = jax.random.uniform(ks[3], (L, A), jnp.float32)
    arcS = arcS / arcS.sum(1, keepdims=True)
    transition = jax.random.uniform(ks[4], (L, A, C, C2), jnp.float32)
    transition = transition / transition.sum(axis=2, keepdims=True)

    labels = jax.random.randint(ks[5], (B,), 0, K)
    stats = jax.random.randint(ks[6], (B, L, A, C2), 0, 4).astype(jnp.float32)
    stats = stats.at[0, 0, 1, :].set(0.0)             # exercise neighbDim==0 path

    # grid-invariant weights built once (hoisted out of the forward call path)
    weights = build_cgmm_layer_weights(em_tab, layerS, arcS, transition)

    layer0_fwd = jax.jit(cgmm_layer0_forward)
    layer_fwd = jax.jit(cgmm_layer_forward)

    # layer-0 forward
    post0, lik0 = layer0_fwd(labels, prior, em_tab)
    # generic-layer forward; stats fed as bf16 (counts 0..3 are exact in bf16)
    post_ui, lik = layer_fwd(labels, stats.astype(jnp.bfloat16), weights)
    jax.block_until_ready((post0, lik0, post_ui, lik))

    # verify against plain-JAX f32 references (tolerances cover the approx
    # neighbour-count reciprocal and default-precision MXU matmuls)
    r_post0, r_lik0 = _ref_layer0(labels, prior, em_tab)
    r_post_ui, r_lik = _ref_layer(labels, stats, em_tab, layerS, arcS,
                                  transition)
    np.testing.assert_allclose(np.asarray(post0), np.asarray(r_post0),
                               rtol=1e-2, atol=1e-4)
    np.testing.assert_allclose(float(lik0), float(r_lik0), rtol=1e-2, atol=5e-2)
    np.testing.assert_allclose(np.asarray(post_ui), np.asarray(r_post_ui),
                               rtol=1e-2, atol=1e-4)
    np.testing.assert_allclose(float(lik), float(r_lik), rtol=1e-2, atol=5e-2)

    print("KERNEL_OK")
</pallas_src>

<mosaic_0001>
module attributes {stable_mosaic.version = 11 : i64} {
  func.func @_cgmm_layer0_kernel(%arg0: i32, %arg1: memref<16x8xf32, #tpu.memory_space<vmem>>, %arg2: memref<1x8xf32, #tpu.memory_space<vmem>>, %arg3: memref<16x8xf32, #tpu.memory_space<vmem>>, %arg4: memref<16x1xf32, #tpu.memory_space<vmem>>) attributes {dimension_semantics = [#tpu.dimension_semantics<parallel>], iteration_bounds = array<i64: 2>, scalar_prefetch = 0 : i64, scratch_operands = 0 : i64, tpu.core_type = #tpu.core_type<tc>, window_params = [{transform_indices = @transform_0, window_bounds = array<i64: 16, 8>}, {pipeline_mode = #tpu.pipeline_mode<synchronous>, transform_indices = @transform_1, window_bounds = array<i64: 1, 8>}, {transform_indices = @transform_2, window_bounds = array<i64: 16, 8>}, {transform_indices = @transform_3, window_bounds = array<i64: 16, 1>}]} {
    %c0 = arith.constant 0 : index
    %c0_0 = arith.constant 0 : index
    %0 = vector.load %arg1[%c0, %c0_0] : memref<16x8xf32, #tpu.memory_space<vmem>>, vector<16x8xf32>
    %c0_1 = arith.constant 0 : index
    %c0_2 = arith.constant 0 : index
    %1 = vector.load %arg2[%c0_1, %c0_2] : memref<1x8xf32, #tpu.memory_space<vmem>>, vector<1x8xf32>
    %2 = vector.broadcast %1 : vector<1x8xf32> to vector<16x8xf32>
    %3 = arith.mulf %0, %2 : vector<16x8xf32>
    %cst = arith.constant dense<0.000000e+00> : vector<16xf32>
    %4 = vector.multi_reduction <add>, %3, %cst [1] : vector<16x8xf32> to vector<16xf32>
    %5 = vector.shape_cast %4 : vector<16xf32> to vector<16x1xf32>
    %6 = tpu.reciprocal %5 {approx = true} : vector<16x1xf32> -> vector<16x1xf32>
    %7 = arith.mulf %5, %6 : vector<16x1xf32>
    %cst_3 = arith.constant 2.000000e+00 : f32
    %8 = vector.broadcast %cst_3 : f32 to vector<16x1xf32>
    %9 = arith.subf %8, %7 : vector<16x1xf32>
    %10 = arith.mulf %6, %9 : vector<16x1xf32>
    %11 = vector.broadcast %10 : vector<16x1xf32> to vector<16x8xf32>
    %12 = arith.mulf %3, %11 : vector<16x8xf32>
    %c0_4 = arith.constant 0 : index
    %c0_5 = arith.constant 0 : index
    %13 = vector.load %arg3[%c0_4, %c0_5] : memref<16x8xf32, #tpu.memory_space<vmem>>, vector<16x8xf32>
    tpu.vector_store %arg3[%c0_4, %c0_5], %12 {strides = array<i32>} : memref<16x8xf32, #tpu.memory_space<vmem>>, vector<16x8xf32>,
    %cst_6 = arith.constant 0.000000e+00 : f32
    %14 = vector.broadcast %cst_6 : f32 to vector<16x8xf32>
    %15 = arith.cmpf ogt, %3, %14 : vector<16x8xf32>
    %cst_7 = arith.constant 1.000000e+00 : f32
    %16 = vector.broadcast %cst_7 : f32 to vector<16x8xf32>
    %17 = arith.select %15, %3, %16 : vector<16x8xi1>, vector<16x8xf32>
    %18 = math.log %17 : vector<16x8xf32>
    %19 = arith.mulf %12, %18 : vector<16x8xf32>
    %cst_8 = arith.constant dense<0.000000e+00> : vector<16xf32>
    %20 = vector.multi_reduction <add>, %19, %cst_8 [1] : vector<16x8xf32> to vector<16xf32>
    %21 = vector.shape_cast %20 : vector<16xf32> to vector<16x1xf32>
    %c0_9 = arith.constant 0 : index
    %c0_10 = arith.constant 0 : index
    %22 = vector.load %arg4[%c0_9, %c0_10] : memref<16x1xf32, #tpu.memory_space<vmem>>, vector<16x1xf32>
    tpu.vector_store %arg4[%c0_9, %c0_10], %21 {strides = array<i32>} : memref<16x1xf32, #tpu.memory_space<vmem>>, vector<16x1xf32>,
    return
  }
  func.func @transform_0(%arg0: i32) -> (i32, i32) {
    %c0_i32 = arith.constant 0 : i32
    %c0_i32_0 = arith.constant 0 : i32
    return %arg0, %c0_i32 : i32, i32
  }
  func.func @transform_1(%arg0: i32) -> (i32, i32) {
    %c0_i32 = arith.constant 0 : i32
    %c0_i32_0 = arith.constant 0 : i32
    %c0_i32_1 = arith.constant 0 : i32
    return %c0_i32, %c0_i32_0 : i32, i32
  }
  func.func @transform_2(%arg0: i32) -> (i32, i32) {
    %c0_i32 = arith.constant 0 : i32
    %c0_i32_0 = arith.constant 0 : i32
    return %arg0, %c0_i32 : i32, i32
  }
  func.func @transform_3(%arg0: i32) -> (i32, i32) {
    %c0_i32 = arith.constant 0 : i32
    %c0_i32_0 = arith.constant 0 : i32
    return %arg0, %c0_i32 : i32, i32
  }
}

</mosaic_0001>

<llo_original>
// kernel: cgmm_layer0_forward.1
$region0: #{cgmm_layer0_forward.1}
  #allocation0 [shape = 'u32[]', space=smem, size = 0x4, offset = 0x4, fixed_abs, tag = 'smem constant byte address 0x4 - core index']
  #allocation1 [shape = 'u32[144,128]{1,0:T(1,128)}', space=vmem, size = 0x12000, scoped, tag = 'internal scratch']
  %s0 = inlined_call_operand.vmem [shape: f32[20,8], index: 0, kind: input, shape index: {}]
  %s1 = inlined_call_operand.vmem [shape: f32[1,8], index: 1, kind: input, shape index: {}]
  %s2 = inlined_call_operand.vmem [shape: f32[20,8], index: 2, kind: output, shape index: {0}]
  %s3 = inlined_call_operand.vmem [shape: f32[20,1], index: 3, kind: output, shape index: {1}]
  %4 = xla_tuple %s2, %s3
  %s5 = sld [smem:[#allocation0]]
  $region145: #{cgmm_layer0_forward.1} parent=0
    _
  %s7 = ssub.s32 1, %s5
  %s8 = scalar_select 0, %s7, %s5
  $region1: #{cgmm_layer0_forward.1} parent=0
    #allocation2 [shape = 'u8[16384]{0}', space=vmem, size = 0x4000, scoped, tag = 'output window, operand 0']
    #allocation3 [shape = 'u8[16384]{0}', space=vmem, size = 0x4000, scoped, tag = 'output window, operand 1']
    loop: start=0, step=1, limit=4
    $region2: #{cgmm_layer0_forward.1} parent=1 // loop_pre_header
      _
    $region3: #{cgmm_layer0_forward.1} parent=1 // loop_header
      %s10 = sphi 0, %s14
      %p11 = scmp.ge.s32.totalorder %s10, 4
      %s20 = sphi 0, %s22
      %s23 = sphi 0, %s20
      %s24 = sphi 0, %s23
      %s40 = sphi 0, %s24
      %s44 = sphi 0, %s44
      %s46 = sphi 0, %s44
      %s47 = sphi 0, %s46
      %s61 = sphi 0, %s47
      %s67 = sphi 0, %s69
      %s70 = sphi 0, %s67
      %s71 = sphi 0, %s70
      %s87 = sphi 0, %s71
      %s93 = sphi 0, %s95
      %s96 = sphi 0, %s93
      %s97 = sphi 0, %s96
      %s113 = sphi 0, %s97
    $region4: #{cgmm_layer0_forward.1} parent=1 // loop_header_branch
      %13 = sbr.rel (%p11) target = $region8
    $region5: #{cgmm_layer0_forward.1} parent=1 // loop_body
      %s15 = ssub.s32 %s10, 1
      %s16 = ssub.s32 %s10, 2
      %s17 = sadd.s32 %s10, 1
      %s18 = ssub.s32 %s10, %s17
      %p19 = scmp.eq.s32.totalorder %s18, 0
      %s21 = sadd.s32 %s20, 1
      %s22 = scalar_select %p19, %s20, %s21
      %p25 = pneg %p19
      %p26 = scmp.eq.s32.totalorder %s10, 1
      %p27 = por %p25, %p26
      %p28 = scmp.ne.s32.totalorder %s20, %s23
      %p29 = scmp.eq.s32.totalorder %s10, 0
      %p30 = por %p28, %p29
      %p31 = scmp.ne.s32.totalorder %s20, %s23
      %p32 = scmp.eq.s32.totalorder %s15, 1
      %p33 = por %p31, %p32
      %p34 = scmp.ne.s32.totalorder %s23, %s24
      %p35 = scmp.eq.s32.totalorder %s15, 0
      %p36 = por %p34, %p35
      %p37 = scmp.ne.s32.totalorder %s23, %s24
      %p38 = scmp.eq.s32.totalorder %s16, 1
      %p39 = por %p37, %p38
      %p41 = scmp.ne.s32.totalorder %s24, %s40
      %p42 = scmp.eq.s32.totalorder %s16, 0
      %p43 = por %p41, %p42
      %s45 = sadd.s32 %s44, 1
      %p48 = scmp.eq.s32.totalorder %s10, 1
      %p49 = scmp.ne.s32.totalorder %s44, %s46
      %p50 = scmp.eq.s32.totalorder %s10, 0
      %p51 = por %p49, %p50
      %p52 = scmp.ne.s32.totalorder %s44, %s46
      %p53 = scmp.eq.s32.totalorder %s15, 1
      %p54 = por %p52, %p53
      %p55 = scmp.ne.s32.totalorder %s46, %s47
      %p56 = scmp.eq.s32.totalorder %s15, 0
      %p57 = por %p55, %p56
      %p58 = scmp.ne.s32.totalorder %s46, %s47
      %p59 = scmp.eq.s32.totalorder %s16, 1
      %p60 = por %p58, %p59
      %p62 = scmp.ne.s32.totalorder %s47, %s61
      %p63 = scmp.eq.s32.totalorder %s16, 0
      %p64 = por %p62, %p63
      %s65 = ssub.s32 %s10, %s17
      %p66 = scmp.eq.s32.totalorder %s65, 0
      %s68 = sadd.s32 %s67, 1
      %s69 = scalar_select %p66, %s67, %s68
      %p72 = pneg %p66
      %p73 = scmp.eq.s32.totalorder %s10, 1
      %p74 = por %p72, %p73
      %p75 = scmp.ne.s32.totalorder %s67, %s70
      %p76 = scmp.eq.s32.totalorder %s10, 0
      %p77 = por %p75, %p76
      %p78 = scmp.ne.s32.totalorder %s67, %s70
      %p79 = scmp.eq.s32.totalorder %s15, 1
      %p80 = por %p78, %p79
      %p81 = scmp.ne.s32.totalorder %s70, %s71
      %p82 = scmp.eq.s32.totalorder %s15, 0
      %p83 = por %p81, %p82
      %p84 = scmp.ne.s32.totalorder %s70, %s71
      %p85 = scmp.eq.s32.totalorder %s16, 1
      %p86 = por %p84, %p85
      %p88 = scmp.ne.s32.totalorder %s71, %s87
      %p89 = scmp.eq.s32.totalorder %s16, 0
      %p90 = por %p88, %p89
      %s91 = ssub.s32 %s10, %s17
      %p92 = scmp.eq.s32.totalorder %s91, 0
      %s94 = sadd.s32 %s93, 1
      %s95 = scalar_select %p92, %s93, %s94
      %p98 = pneg %p92
      %p99 = scmp.eq.s32.totalorder %s10, 1
      %p100 = por %p98, %p99
      %p101 = scmp.ne.s32.totalorder %s93, %s96
      %p102 = scmp.eq.s32.totalorder %s10, 0
      %p103 = por %p101, %p102
      %p104 = scmp.ne.s32.totalorder %s93, %s96
      %p105 = scmp.eq.s32.totalorder %s15, 1
      %p106 = por %p104, %p105
      %p107 = scmp.ne.s32.totalorder %s96, %s97
      %p108 = scmp.eq.s32.totalorder %s15, 0
      %p109 = por %p107, %p108
      %p110 = scmp.ne.s32.totalorder %s96, %s97
      %p111 = scmp.eq.s32.totalorder %s16, 1
      %p112 = por %p110, %p111
      %p114 = scmp.ne.s32.totalorder %s97, %s113
      %p115 = scmp.eq.s32.totalorder %s16, 0
      %p116 = por %p114, %p115
      %p117 = scmp.le.s32.totalorder 1, %s10
      %p118 = scmp.lt.s32.totalorder %s10, 3
      %p119 = pnand %p117, %p118
      %p120 = pneg %p119
      // Predicated region
      $region9: #{cgmm_layer0_forward.1} parent=5 // pred_check
        _
      $region10: #{cgmm_layer0_forward.1} parent=5 // pred_check_branch
        %122 = sbr.rel (%p119) target = $region12
      $region11: #{cgmm_layer0_forward.1} parent=5 // pred_region
        %s123 = ssub.s32 %s10, 1
        // Predicated region
        $region13: #{cgmm_layer0_forward.1} parent=11 // pred_check
          %p124 = pneg %p57
        $region14: #{cgmm_layer0_forward.1} parent=11 // pred_check_branch
          %126 = sbr.rel (%p124) target = $region16
        $region15: #{cgmm_layer0_forward.1} parent=11 // pred_region
          _
        $region16: #{cgmm_layer0_forward.1} parent=11 // pred_fallthru
          _
      $region12: #{cgmm_layer0_forward.1} parent=5 // pred_fallthru
        _
      %p127 = scmp.lt.s32.totalorder %s10, 2
      // Predicated region
      $region17: #{cgmm_layer0_forward.1} parent=5 // pred_check
        %p128 = pneg %p127
      $region18: #{cgmm_layer0_forward.1} parent=5 // pred_check_branch
        %130 = sbr.rel (%p128) target = $region20
      $region19: #{cgmm_layer0_forward.1} parent=5 // pred_region
        // Predicated region
        $region21: #{cgmm_layer0_forward.1} parent=19 // pred_check
          %p131 = pneg %p30
        $region22: #{cgmm_layer0_forward.1} parent=19 // pred_check_branch
          %133 = sbr.rel (%p131) target = $region24
        $region23: #{cgmm_layer0_forward.1} parent=19 // pred_region
          %s134 = smul.u32 2, %s10
          %s135 = ssub.s32 3, %s134
          %p136 = scmp.lt.s32.totalorder %s135, 2
          %s137 = scalar_select %p136, %s135, 2
          %s138 = smul.u32 128, %s137
          %p139 = scmp.lt.s32.totalorder %s134, 2
          %s140 = scalar_select %p139, %s134, 2
          %s141 = smul.addr %s140, 8
          %s142 = scalar_lea.vmem %s0, %s141
          %s143 = smul.u32 2, %s10
          %s144 = ssub.s32 3, %s143
          %p145 = scmp.lt.s32.totalorder %s144, 2
          %s146 = scalar_select %p145, %s144, 2
          %s147 = smul.u32 128, %s146
        $region24: #{cgmm_layer0_forward.1} parent=19 // pred_fallthru
          _
      $region20: #{cgmm_layer0_forward.1} parent=5 // pred_fallthru
        _
      %p148 = scmp.le.s32.totalorder 1, %s10
      %p149 = scmp.lt.s32.totalorder %s10, 3
      %p150 = pnand %p148, %p149
      %p151 = pneg %p150
      // Predicated region
      $region25: #{cgmm_layer0_forward.1} parent=5 // pred_check
        _
      $region26: #{cgmm_layer0_forward.1} parent=5 // pred_check_branch
        %153 = sbr.rel (%p150) target = $region28
      $region27: #{cgmm_layer0_forward.1} parent=5 // pred_region
        %s154 = ssub.s32 %s10, 1
        %s155 = smul.u32 2, %s15
        %s156 = ssub.s32 3, %s155
        %p157 = scmp.lt.s32.totalorder %s156, 2
        %s158 = scalar_select %p157, %s156, 2
        %s159 = smul.u32 128, %s158
        %p160 = scmp.lt.s32.totalorder %s155, 2
        %s161 = scalar_select %p160, %s155, 2
        %s162 = smul.addr %s161, 8
        %s163 = scalar_lea.vmem %s0, %s162
        %p164 = pneg %p36
        %p165 = pneg %p33
        %p166 = pneg %p57
        %p167 = pneg %p54
        %p168 = pneg %p83
        %p169 = pneg %p80
        %s170 = sand.u32 %s70, 1
        %s171 = sand.u32 %s70, 1
        %s172 = smul.addr %s171, 16
        %s173 = scalar_lea.vmem [#allocation2], %s172
        %p174 = pneg %p109
        %p175 = pneg %p106
        %s176 = sand.u32 %s96, 1
        %s177 = sand.u32 %s96, 1
        %s178 = smul.addr %s177, 16
        %s179 = scalar_lea.vmem [#allocation3], %s178
        %s180 = smul.u32 2, %s15
        %s181 = ssub.s32 3, %s180
        %p182 = scmp.lt.s32.totalorder %s181, 2
        %s183 = scalar_select %p182, %s181, 2
        %s184 = smul.u32 128, %s183
        %p185 = scmp.lt.s32.totalorder %s180, 2
        %s186 = scalar_select %p185, %s180, 2
        %s187 = smul.addr %s186, 8
        %s188 = scalar_lea.vmem %s0, %s187
        %s189 = smul.u32 2, %s15
        %s190 = ssub.s32 3, %s189
        %p191 = scmp.lt.s32.totalorder %s190, 2
        %s192 = scalar_select %p191, %s190, 2
        %s193 = smul.u32 128, %s192
        %s194 = smul.u32 2, %s15
        %s195 = ssub.s32 3, %s194
        %p196 = scmp.lt.s32.totalorder %s195, 2
        %s197 = scalar_select %p196, %s195, 2
        %s198 = smul.u32 128, %s197
        %s199 = smul.u32 2, %s15
        %s200 = ssub.s32 3, %s199
        %p201 = scmp.lt.s32.totalorder %s200, 2
        %s202 = scalar_select %p201, %s200, 2
        %s203 = smul.u32 128, %s202
        %v204 = vld [vmem:[%s188] sm:$0xff]
        %v205 = vld [vmem:[%s188 + $0x8] sm:$0xff]
        %v206 = vld [vmem:[%s1] sm:$0x1]
        %v208 = vlaneseq
        %v209 = vshrl.u32 %v208, 7
        %v210 = vsub.s32 0, %v209
        %v211 = vrot.slane %v206, %v210
        %v213 = vmul.f32 %v204, %v211
        %v214 = vmul.f32 %v205, %v211
        %vm215 = vcmask 64512
        %v216 = vsel %vm215, %v213, 0.0
        %217 = vadd.xlane.f32.xlu0 %v216
        %v218 = vpop.xlane.xlu0 %217
        %v219 = vsel %vm215, %v214, 0.0
        %220 = vadd.xlane.f32.xlu0 %v219
        %v221 = vpop.xlane.xlu0 %220
        %v222 = vrcp.pop %v218
        %v223 = vrcp.pop %v221
        %v224 = vmul.f32 %v218, %v222
        %v225 = vmul.f32 %v221, %v223
        %v226 = vsub.f32 2.0, %v224
        %v227 = vsub.f32 2.0, %v225
        %v228 = vmul.f32 %v222, %v226
        %v229 = vmul.f32 %v223, %v227
        %v230 = vmul.f32 %v213, %v228
        %v231 = vmul.f32 %v214, %v229
        %232 = vst.msk [vmem:[%s173] sm:$0xff] %vm215, %v230
        %233 = vst.msk [vmem:[%s173 + $0x8] sm:$0xff] %vm215, %v231
        %vm234 = vcmp.gt.f32.partialorder %v213, 0.0
        %vm235 = vcmp.gt.f32.partialorder %v214, 0.0
        %v236 = vsel %vm234, %v213, 1.0
        %v237 = vsel %vm235, %v214, 1.0
        %v238 = vlog2.pop %v236
        %v239 = vmul.f32 %v238, 0.6931472
        %v240 = vlog2.pop %v237
        %v241 = vmul.f32 %v240, 0.6931472
        %v242 = vmul.f32 %v230, %v239
        %v243 = vmul.f32 %v231, %v241
        %v244 = vsel %vm215, %v242, 0.0
        %245 = vadd.xlane.f32.xlu0 %v244
        %v246 = vpop.xlane.xlu0 %245
        %v247 = vsel %vm215, %v243, 0.0
        %248 = vadd.xlane.f32.xlu0 %v247
        %v249 = vpop.xlane.xlu0 %248
        %vm250 = vcmask 7168
        %251 = vst.msk [vmem:[%s179] sm:$0xff] %vm250, %v246
        %252 = vst.msk [vmem:[%s179 + $0x8] sm:$0xff] %vm250, %v249
        %s253 = sand.u32 %s70, 1
        %s254 = sand.u32 %s70, 1
        %s255 = smul.addr %s254, 16
        %s256 = scalar_lea.vmem [#allocation2], %s255
        %s257 = sand.u32 %s96, 1
        %s258 = sand.u32 %s96, 1
        %s259 = smul.addr %s258, 16
        %s260 = scalar_lea.vmem [#allocation3], %s259
        // Predicated region
        $region29: #{cgmm_layer0_forward.1} parent=27 // pred_check
          %p261 = pneg %p80
        $region30: #{cgmm_layer0_forward.1} parent=27 // pred_check_branch
          %263 = sbr.rel (%p261) target = $region32
        $region31: #{cgmm_layer0_forward.1} parent=27 // pred_region
          %s264 = smul.u32 2, %s15
          %s265 = ssub.s32 3, %s264
          %p266 = scmp.lt.s32.totalorder %s265, 2
          %s267 = scalar_select %p266, %s265, 2
          %s268 = smul.u32 128, %s267
          %p269 = scmp.ne.s32.totalorder 0, %s268
          %s270 = smul.addr %s264, 8
          %s271 = scalar_lea.vmem %s2, %s270
          // Predicated region
          $region33: #{cgmm_layer0_forward.1} parent=31 // pred_check
            %p272 = pneg %p269
          $region34: #{cgmm_layer0_forward.1} parent=31 // pred_check_branch
            %274 = sbr.rel (%p272) target = $region36
          $region35: #{cgmm_layer0_forward.1} parent=31 // pred_region
            // Predicated region
            $region37: #{cgmm_layer0_forward.1} parent=35 // pred_check
              _
            $region38: #{cgmm_layer0_forward.1} parent=35 // pred_check_branch
              %276 = sbr.rel (0) target = $region40
            $region39: #{cgmm_layer0_forward.1} parent=35 // pred_region
              // Predicated region
              $region59: #{cgmm_layer0_forward.1} parent=39 // pred_check
                _
              $region60: #{cgmm_layer0_forward.1} parent=39 // pred_check_branch
                %328 = sbr.rel (0) target = $region62
              $region61: #{cgmm_layer0_forward.1} parent=39 // pred_region
                %s329 = sshrl.u32 %s267, 1
                // While loop
                $region63: #{cgmm_layer0_forward.1} parent=61 // loop_pre_header
                  _
                $region64: #{cgmm_layer0_forward.1} parent=61 // loop_header
                  %s331 = sphi 0, %s333
                  %p332 = scmp.ge.s32.totalorder %s331, %s329
                  %s336 = sphi 0, %s345
                  %s337 = sphi %s256, %s348
                  %s338 = sphi %s271, %s349
                $region65: #{cgmm_layer0_forward.1} parent=61 // loop_header_branch
                  %335 = sbr.rel (%p332) target = $region69
                $region66: #{cgmm_layer0_forward.1} parent=61 // loop_body
                  %v339 = vld [vmem:[%s337] sm:$0xff]
                  %340 = vst [vmem:[%s338] sm:$0xff] %v339
                  %v341 = vld [vmem:[%s337 + $0x8] sm:$0xff]
                  %342 = vst [vmem:[%s338 + $0x8] sm:$0xff] %v341
                  %s343 = sadd.s32 1, %s336
                  %p344 = scmp.ge.s32.totalorder %s343, %s329
                  %s345 = scalar_select %p344, 0, %s343
                  %s346 = smul.u32 %s345, 16
                  %s347 = smul.u32 %s345, 16
                  %s348 = scalar_lea.vmem %s256, %s346 [#allocation2]
                  %s349 = scalar_lea.vmem %s271, %s347
                $region67: #{cgmm_layer0_forward.1} parent=61 // loop_footer
                  %s333 = sadd.s32 %s331, 1
                $region68: #{cgmm_layer0_forward.1} parent=61 // loop_footer_branch
                  %330 = sbr.rel target = $region64
                $region69: #{cgmm_layer0_forward.1} parent=61 // loop_exit
                  _
                %s350 = sshrl.u32 %s267, 1
                %s351 = sand.u32 %s267, 1
                %s352 = smul.u32 %s350, 2
                %s353 = smul.u32 8, %s352
                %s354 = scalar_lea.vmem %s256, %s353 [#allocation2]
                %s355 = smul.u32 8, %s352
                %s356 = scalar_lea.vmem %s271, %s355
                // While loop
                $region70: #{cgmm_layer0_forward.1} parent=61 // loop_pre_header
                  _
                $region71: #{cgmm_layer0_forward.1} parent=61 // loop_header
                  %s358 = sphi 0, %s360
                  %p359 = scmp.ge.s32.totalorder %s358, %s351
                  %s363 = sphi 0, %s370
                  %s364 = sphi %s354, %s373
                  %s365 = sphi %s356, %s374
                $region72: #{cgmm_layer0_forward.1} parent=61 // loop_header_branch
                  %362 = sbr.rel (%p359) target = $region76
                $region73: #{cgmm_layer0_forward.1} parent=61 // loop_body
                  %v366 = vld [vmem:[%s364] sm:$0xff]
                  %367 = vst [vmem:[%s365] sm:$0xff] %v366
                  %s368 = sadd.s32 1, %s363
                  %p369 = scmp.ge.s32.totalorder %s368, %s351
                  %s370 = scalar_select %p369, 0, %s368
                  %s371 = smul.u32 %s370, 8
                  %s372 = smul.u32 %s370, 8
                  %s373 = scalar_lea.vmem %s354, %s371 [#allocation2]
                  %s374 = scalar_lea.vmem %s356, %s372
                $region74: #{cgmm_layer0_forward.1} parent=61 // loop_footer
                  %s360 = sadd.s32 %s358, 1
                $region75: #{cgmm_layer0_forward.1} parent=61 // loop_footer_branch
                  %357 = sbr.rel target = $region71
                $region76: #{cgmm_layer0_forward.1} parent=61 // loop_exit
                  _
              $region62: #{cgmm_layer0_forward.1} parent=39 // pred_fallthru
                _
              // Predicated region
              $region77: #{cgmm_layer0_forward.1} parent=39 // pred_check
                _
              $region78: #{cgmm_layer0_forward.1} parent=39 // pred_check_branch
                %376 = sbr.rel target = $region80
              $region79: #{cgmm_layer0_forward.1} parent=39 // pred_region
                _
              $region80: #{cgmm_layer0_forward.1} parent=39 // pred_fallthru
                _
            $region40: #{cgmm_layer0_forward.1} parent=35 // pred_fallthru
              _
            // Predicated region
            $region41: #{cgmm_layer0_forward.1} parent=35 // pred_check
              _
            $region42: #{cgmm_layer0_forward.1} parent=35 // pred_check_branch
              %278 = sbr.rel target = $region44
            $region43: #{cgmm_layer0_forward.1} parent=35 // pred_region
              %s280 = ssub.s32 256, 1
              %s281 = sshrl.u32 %s267, 1
              // While loop
              $region45: #{cgmm_layer0_forward.1} parent=43 // loop_pre_header
                _
              $region46: #{cgmm_layer0_forward.1} parent=43 // loop_header
                %s283 = sphi 0, %s285
                %p284 = scmp.ge.s32.totalorder %s283, %s281
                %s288 = sphi 0, %s297
                %s289 = sphi %s256, %s300
                %s290 = sphi %s271, %s301
              $region47: #{cgmm_layer0_forward.1} parent=43 // loop_header_branch
                %287 = sbr.rel (%p284) target = $region51
              $region48: #{cgmm_layer0_forward.1} parent=43 // loop_body
                %v291 = vld [vmem:[%s289] sm:%s280]
                %292 = vst [vmem:[%s290] sm:%s280] %v291
                %v293 = vld [vmem:[%s289 + $0x8] sm:%s280]
                %294 = vst [vmem:[%s290 + $0x8] sm:%s280] %v293
                %s295 = sadd.s32 1, %s288
                %p296 = scmp.ge.s32.totalorder %s295, %s281
                %s297 = scalar_select %p296, 0, %s295
                %s298 = smul.u32 %s297, 16
                %s299 = smul.u32 %s297, 16
                %s300 = scalar_lea.vmem %s256, %s298 [#allocation2]
                %s301 = scalar_lea.vmem %s271, %s299
              $region49: #{cgmm_layer0_forward.1} parent=43 // loop_footer
                %s285 = sadd.s32 %s283, 1
              $region50: #{cgmm_layer0_forward.1} parent=43 // loop_footer_branch
                %282 = sbr.rel target = $region46
              $region51: #{cgmm_layer0_forward.1} parent=43 // loop_exit
                _
              %s302 = sshrl.u32 %s267, 1
              %s303 = sand.u32 %s267, 1
              %s304 = smul.u32 %s302, 2
              %s305 = smul.u32 8, %s304
              %s306 = scalar_lea.vmem %s256, %s305 [#allocation2]
              %s307 = smul.u32 8, %s304
              %s308 = scalar_lea.vmem %s271, %s307
              // While loop
              $region52: #{cgmm_layer0_forward.1} parent=43 // loop_pre_header
                _
              $region53: #{cgmm_layer0_forward.1} parent=43 // loop_header
                %s310 = sphi 0, %s312
                %p311 = scmp.ge.s32.totalorder %s310, %s303
                %s315 = sphi 0, %s322
                %s316 = sphi %s306, %s325
                %s317 = sphi %s308, %s326
              $region54: #{cgmm_layer0_forward.1} parent=43 // loop_header_branch
                %314 = sbr.rel (%p311) target = $region58
              $region55: #{cgmm_layer0_forward.1} parent=43 // loop_body
                %v318 = vld [vmem:[%s316] sm:%s280]
                %319 = vst [vmem:[%s317] sm:%s280] %v318
                %s320 = sadd.s32 1, %s315
                %p321 = scmp.ge.s32.totalorder %s320, %s303
                %s322 = scalar_select %p321, 0, %s320
                %s323 = smul.u32 %s322, 8
                %s324 = smul.u32 %s322, 8
                %s325 = scalar_lea.vmem %s306, %s323 [#allocation2]
                %s326 = scalar_lea.vmem %s308, %s324
              $region56: #{cgmm_layer0_forward.1} parent=43 // loop_footer
                %s312 = sadd.s32 %s310, 1
              $region57: #{cgmm_layer0_forward.1} parent=43 // loop_footer_branch
                %309 = sbr.rel target = $region53
              $region58: #{cgmm_layer0_forward.1} parent=43 // loop_exit
                _
            $region44: #{cgmm_layer0_forward.1} parent=35 // pred_fallthru
              _
          $region36: #{cgmm_layer0_forward.1} parent=31 // pred_fallthru
            _
          %377 = vnop
        $region32: #{cgmm_layer0_forward.1} parent=27 // pred_fallthru
          _
        // Predicated region
        $region81: #{cgmm_layer0_forward.1} parent=27 // pred_check
          %p378 = pneg %p106
        $region82: #{cgmm_layer0_forward.1} parent=27 // pred_check_branch
          %380 = sbr.rel (%p378) target = $region84
        $region83: #{cgmm_layer0_forward.1} parent=27 // pred_region
          %s381 = smul.u32 2, %s15
          %s382 = ssub.s32 3, %s381
          %p383 = scmp.lt.s32.totalorder %s382, 2
          %s384 = scalar_select %p383, %s382, 2
          %s385 = smul.u32 128, %s384
          %p386 = scmp.ne.s32.totalorder 0, %s385
          %s387 = smul.addr %s381, 8
          %s388 = scalar_lea.vmem %s3, %s387
          // Predicated region
          $region85: #{cgmm_layer0_forward.1} parent=83 // pred_check
            %p389 = pneg %p386
          $region86: #{cgmm_layer0_forward.1} parent=83 // pred_check_branch
            %391 = sbr.rel (%p389) target = $region88
          $region87: #{cgmm_layer0_forward.1} parent=83 // pred_region
            // Predicated region
            $region89: #{cgmm_layer0_forward.1} parent=87 // pred_check
              _
            $region90: #{cgmm_layer0_forward.1} parent=87 // pred_check_branch
              %393 = sbr.rel (0) target = $region92
            $region91: #{cgmm_layer0_forward.1} parent=87 // pred_region
              // Predicated region
              $region111: #{cgmm_layer0_forward.1} parent=91 // pred_check
                _
              $region112: #{cgmm_layer0_forward.1} parent=91 // pred_check_branch
                %445 = sbr.rel (0) target = $region114
              $region113: #{cgmm_layer0_forward.1} parent=91 // pred_region
                %s446 = sshrl.u32 %s384, 1
                // While loop
                $region115: #{cgmm_layer0_forward.1} parent=113 // loop_pre_header
                  _
                $region116: #{cgmm_layer0_forward.1} parent=113 // loop_header
                  %s448 = sphi 0, %s450
                  %p449 = scmp.ge.s32.totalorder %s448, %s446
                  %s453 = sphi 0, %s462
                  %s454 = sphi %s260, %s465
                  %s455 = sphi %s388, %s466
                $region117: #{cgmm_layer0_forward.1} parent=113 // loop_header_branch
                  %452 = sbr.rel (%p449) target = $region121
                $region118: #{cgmm_layer0_forward.1} parent=113 // loop_body
                  %v456 = vld [vmem:[%s454] sm:$0xff]
                  %457 = vst [vmem:[%s455] sm:$0xff] %v456
                  %v458 = vld [vmem:[%s454 + $0x8] sm:$0xff]
                  %459 = vst [vmem:[%s455 + $0x8] sm:$0xff] %v458
                  %s460 = sadd.s32 1, %s453
                  %p461 = scmp.ge.s32.totalorder %s460, %s446
                  %s462 = scalar_select %p461, 0, %s460
                  %s463 = smul.u32 %s462, 16
                  %s464 = smul.u32 %s462, 16
                  %s465 = scalar_lea.vmem %s260, %s463 [#allocation3]
                  %s466 = scalar_lea.vmem %s388, %s464
                $region119: #{cgmm_layer0_forward.1} parent=113 // loop_footer
                  %s450 = sadd.s32 %s448, 1
                $region120: #{cgmm_layer0_forward.1} parent=113 // loop_footer_branch
                  %447 = sbr.rel target = $region116
                $region121: #{cgmm_layer0_forward.1} parent=113 // loop_exit
                  _
                %s467 = sshrl.u32 %s384, 1
                %s468 = sand.u32 %s384, 1
                %s469 = smul.u32 %s467, 2
                %s470 = smul.u32 8, %s469
                %s471 = scalar_lea.vmem %s260, %s470 [#allocation3]
                %s472 = smul.u32 8, %s469
                %s473 = scalar_lea.vmem %s388, %s472
                // While loop
                $region122: #{cgmm_layer0_forward.1} parent=113 // loop_pre_header
                  _
                $region123: #{cgmm_layer0_forward.1} parent=113 // loop_header
                  %s475 = sphi 0, %s477
                  %p476 = scmp.ge.s32.totalorder %s475, %s468
                  %s480 = sphi 0, %s487
                  %s481 = sphi %s471, %s490
                  %s482 = sphi %s473, %s491
                $region124: #{cgmm_layer0_forward.1} parent=113 // loop_header_branch
                  %479 = sbr.rel (%p476) target = $region128
                $region125: #{cgmm_layer0_forward.1} parent=113 // loop_body
                  %v483 = vld [vmem:[%s481] sm:$0xff]
                  %484 = vst [vmem:[%s482] sm:$0xff] %v483
                  %s485 = sadd.s32 1, %s480
                  %p486 = scmp.ge.s32.totalorder %s485, %s468
                  %s487 = scalar_select %p486, 0, %s485
                  %s488 = smul.u32 %s487, 8
                  %s489 = smul.u32 %s487, 8
                  %s490 = scalar_lea.vmem %s471, %s488 [#allocation3]
                  %s491 = scalar_lea.vmem %s473, %s489
                $region126: #{cgmm_layer0_forward.1} parent=113 // loop_footer
                  %s477 = sadd.s32 %s475, 1
                $region127: #{cgmm_layer0_forward.1} parent=113 // loop_footer_branch
                  %474 = sbr.rel target = $region123
                $region128: #{cgmm_layer0_forward.1} parent=113 // loop_exit
                  _
              $region114: #{cgmm_layer0_forward.1} parent=91 // pred_fallthru
                _
              // Predicated region
              $region129: #{cgmm_layer0_forward.1} parent=91 // pred_check
                _
              $region130: #{cgmm_layer0_forward.1} parent=91 // pred_check_branch
                %493 = sbr.rel target = $region132
              $region131: #{cgmm_layer0_forward.1} parent=91 // pred_region
                _
              $region132: #{cgmm_layer0_forward.1} parent=91 // pred_fallthru
                _
            $region92: #{cgmm_layer0_forward.1} parent=87 // pred_fallthru
              _
            // Predicated region
            $region93: #{cgmm_layer0_forward.1} parent=87 // pred_check
              _
            $region94: #{cgmm_layer0_forward.1} parent=87 // pred_check_branch
              %395 = sbr.rel target = $region96
            $region95: #{cgmm_layer0_forward.1} parent=87 // pred_region
              %s397 = ssub.s32 256, 1
              %s398 = sshrl.u32 %s384, 1
              // While loop
              $region97: #{cgmm_layer0_forward.1} parent=95 // loop_pre_header
                _
              $region98: #{cgmm_layer0_forward.1} parent=95 // loop_header
                %s400 = sphi 0, %s402
                %p401 = scmp.ge.s32.totalorder %s400, %s398
                %s405 = sphi 0, %s414
                %s406 = sphi %s260, %s417
                %s407 = sphi %s388, %s418
              $region99: #{cgmm_layer0_forward.1} parent=95 // loop_header_branch
                %404 = sbr.rel (%p401) target = $region103
              $region100: #{cgmm_layer0_forward.1} parent=95 // loop_body
                %v408 = vld [vmem:[%s406] sm:%s397]
                %409 = vst [vmem:[%s407] sm:%s397] %v408
                %v410 = vld [vmem:[%s406 + $0x8] sm:%s397]
                %411 = vst [vmem:[%s407 + $0x8] sm:%s397] %v410
                %s412 = sadd.s32 1, %s405
                %p413 = scmp.ge.s32.totalorder %s412, %s398
                %s414 = scalar_select %p413, 0, %s412
                %s415 = smul.u32 %s414, 16
                %s416 = smul.u32 %s414, 16
                %s417 = scalar_lea.vmem %s260, %s415 [#allocation3]
                %s418 = scalar_lea.vmem %s388, %s416
              $region101: #{cgmm_layer0_forward.1} parent=95 // loop_footer
                %s402 = sadd.s32 %s400, 1
              $region102: #{cgmm_layer0_forward.1} parent=95 // loop_footer_branch
                %399 = sbr.rel target = $region98
              $region103: #{cgmm_layer0_forward.1} parent=95 // loop_exit
                _
              %s419 = sshrl.u32 %s384, 1
              %s420 = sand.u32 %s384, 1
              %s421 = smul.u32 %s419, 2
              %s422 = smul.u32 8, %s421
              %s423 = scalar_lea.vmem %s260, %s422 [#allocation3]
              %s424 = smul.u32 8, %s421
              %s425 = scalar_lea.vmem %s388, %s424
              // While loop
              $region104: #{cgmm_layer0_forward.1} parent=95 // loop_pre_header
                _
              $region105: #{cgmm_layer0_forward.1} parent=95 // loop_header
                %s427 = sphi 0, %s429
                %p428 = scmp.ge.s32.totalorder %s427, %s420
                %s432 = sphi 0, %s439
                %s433 = sphi %s423, %s442
                %s434 = sphi %s425, %s443
              $region106: #{cgmm_layer0_forward.1} parent=95 // loop_header_branch
                %431 = sbr.rel (%p428) target = $region110
              $region107: #{cgmm_layer0_forward.1} parent=95 // loop_body
                %v435 = vld [vmem:[%s433] sm:%s397]
                %436 = vst [vmem:[%s434] sm:%s397] %v435
                %s437 = sadd.s32 1, %s432
                %p438 = scmp.ge.s32.totalorder %s437, %s420
                %s439 = scalar_select %p438, 0, %s437
                %s440 = smul.u32 %s439, 8
                %s441 = smul.u32 %s439, 8
                %s442 = scalar_lea.vmem %s423, %s440 [#allocation3]
                %s443 = scalar_lea.vmem %s425, %s441
              $region108: #{cgmm_layer0_forward.1} parent=95 // loop_footer
                %s429 = sadd.s32 %s427, 1
              $region109: #{cgmm_layer0_forward.1} parent=95 // loop_footer_branch
                %426 = sbr.rel target = $region105
              $region110: #{cgmm_layer0_forward.1} parent=95 // loop_exit
                _
            $region96: #{cgmm_layer0_forward.1} parent=87 // pred_fallthru
              _
          $region88: #{cgmm_layer0_forward.1} parent=83 // pred_fallthru
            _
          %494 = vnop
        $region84: #{cgmm_layer0_forward.1} parent=27 // pred_fallthru
          _
      $region28: #{cgmm_layer0_forward.1} parent=5 // pred_fallthru
        _
      %p495 = scmp.le.s32.totalorder 2, %s10
      // Predicated region
      $region133: #{cgmm_layer0_forward.1} parent=5 // pred_check
        %p496 = pneg %p495
      $region134: #{cgmm_layer0_forward.1} parent=5 // pred_check_branch
        %498 = sbr.rel (%p496) target = $region136
      $region135: #{cgmm_layer0_forward.1} parent=5 // pred_region
        %s499 = ssub.s32 %s10, 2
        // Predicated region
        $region137: #{cgmm_layer0_forward.1} parent=135 // pred_check
          %p500 = pneg %p86
        $region138: #{cgmm_layer0_forward.1} parent=135 // pred_check_branch
          %502 = sbr.rel (%p500) target = $region140
        $region139: #{cgmm_layer0_forward.1} parent=135 // pred_region
          %s503 = sand.u32 %s71, 1
          %s504 = sand.u32 %s71, 1
          %s505 = smul.addr %s504, 16
          %s506 = scalar_lea.vmem [#allocation2], %s505
        $region140: #{cgmm_layer0_forward.1} parent=135 // pred_fallthru
          _
        // Predicated region
        $region141: #{cgmm_layer0_forward.1} parent=135 // pred_check
          %p507 = pneg %p112
        $region142: #{cgmm_layer0_forward.1} parent=135 // pred_check_branch
          %509 = sbr.rel (%p507) target = $region144
        $region143: #{cgmm_layer0_forward.1} parent=135 // pred_region
          %s510 = sand.u32 %s97, 1
          %s511 = sand.u32 %s97, 1
          %s512 = smul.addr %s511, 16
          %s513 = scalar_lea.vmem [#allocation3], %s512
        $region144: #{cgmm_layer0_forward.1} parent=135 // pred_fallthru
          _
      $region136: #{cgmm_layer0_forward.1} parent=5 // pred_fallthru
        _
    $region6: #{cgmm_layer0_forward.1} parent=1 // loop_footer
      %s14 = sadd.s32 1, %s10
    $region7: #{cgmm_layer0_forward.1} parent=1 // loop_footer_branch
      %9 = sbr.rel target = $region3
    $region8: #{cgmm_layer0_forward.1} parent=1 // loop_exit
      _

</llo_original>
